<compile_context>
chip_gen: v5e
topology: v5e:2x2
jax: 0.10.0
libtpu: 0.0.40
codegen_flags: <defaults>
</compile_context>

<pallas_src>
import functools

import jax
import jax.numpy as jnp
from jax.experimental import pallas as pl
from jax.experimental.pallas import tpu as pltpu


def mlp_kernel(x_ref, w1_ref, b1_ref, w2_ref, b2_ref, o_ref):
    # x_ref : (4, TB) VMEM, batch lane-major.
    # w1_ref: (2, 4) SMEM, b1_ref: (2,) SMEM, w2_ref: (1, 2) SMEM, b2_ref: (1,) SMEM.
    # o_ref : (1, TB) VMEM.
    x0 = x_ref[0:1, :]
    x1 = x_ref[1:2, :]
    x2 = x_ref[2:3, :]
    x3 = x_ref[3:4, :]

    # Hidden units: VPU FMAs with scalar (SMEM) weights broadcast over lanes.
    h0 = (w1_ref[0, 0] * x0 + w1_ref[0, 1] * x1
          + w1_ref[0, 2] * x2 + w1_ref[0, 3] * x3 + b1_ref[0])
    h1 = (w1_ref[1, 0] * x0 + w1_ref[1, 1] * x1
          + w1_ref[1, 2] * x2 + w1_ref[1, 3] * x3 + b1_ref[1])
    h0 = jnp.maximum(h0, 0.0)
    h1 = jnp.maximum(h1, 0.0)

    # Output unit.
    o = w2_ref[0, 0] * h0 + w2_ref[0, 1] * h1 + b2_ref[0]
    o_ref[...] = o.astype(o_ref.dtype)


@functools.partial(jax.jit, static_argnames=("tb",))
def net_forward(x, w1, b1, w2, b2, *, tb=65536):
    """x: (B, 4) f32 (PyTorch layout). Weights PyTorch-style: w1 (2,4), b1 (2,),
    w2 (1,2), b2 (1,). Returns (B, 1)."""
    B, F = x.shape
    assert F == 4

    # Lane-dense batch tile: multiple of 128; don't over-pad tiny batches.
    tb_eff = min(int(tb), pl.cdiv(B, 128) * 128)
    tb_eff = max(128, (tb_eff // 128) * 128)
    Bp = pl.cdiv(B, tb_eff) * tb_eff

    # Put batch on the lane axis; zero-pad the tail block (sliced off below).
    xt = jnp.transpose(x)  # (4, B)
    if Bp != B:
        xt = jnp.pad(xt, ((0, 0), (0, Bp - B)))

    out_t = pl.pallas_call(
        mlp_kernel,
        out_shape=jax.ShapeDtypeStruct((1, Bp), x.dtype),
        grid_spec=pltpu.PrefetchScalarGridSpec(
            num_scalar_prefetch=0,
            grid=(Bp // tb_eff,),
            in_specs=[
                pl.BlockSpec((4, tb_eff), lambda i: (0, i)),          # x, lane-major batch
                pl.BlockSpec(memory_space=pltpu.MemorySpace.SMEM),    # w1 (2,4)
                pl.BlockSpec(memory_space=pltpu.MemorySpace.SMEM),    # b1 (2,)
                pl.BlockSpec(memory_space=pltpu.MemorySpace.SMEM),    # w2 (1,2)
                pl.BlockSpec(memory_space=pltpu.MemorySpace.SMEM),    # b2 (1,)
            ],
            out_specs=pl.BlockSpec((1, tb_eff), lambda i: (0, i)),    # lane-dense output
        ),
        compiler_params=pltpu.CompilerParams(
            dimension_semantics=("parallel",),
            vmem_limit_bytes=32 * 1024 * 1024,
        ),
    )(xt, w1, b1, w2, b2)

    return jnp.transpose(out_t[:, :B])  # back to (B, 1) PyTorch layout


if __name__ == "__main__":
    key = jax.random.PRNGKey(0)
    kx, k1, k2, k3, k4 = jax.random.split(key, 5)

    B = 8
    x = jax.random.normal(kx, (B, 4), dtype=jnp.float32)

    # Deterministic param init (mimic PyTorch Linear default U(-1/sqrt(fan_in), 1/sqrt(fan_in)))
    bound1 = 1.0 / jnp.sqrt(4.0)
    w1 = jax.random.uniform(k1, (2, 4), jnp.float32, -bound1, bound1)
    b1 = jax.random.uniform(k2, (2,), jnp.float32, -bound1, bound1)
    bound2 = 1.0 / jnp.sqrt(2.0)
    w2 = jax.random.uniform(k3, (1, 2), jnp.float32, -bound2, bound2)
    b2 = jax.random.uniform(k4, (1,), jnp.float32, -bound2, bound2)

    out = net_forward(x, w1, b1, w2, b2)
    out = jax.block_until_ready(out)

    # Pure-JAX reference check
    ref = jnp.maximum(x @ w1.T + b1, 0.0) @ w2.T + b2
    assert out.shape == (B, 1)
    assert jnp.allclose(out, ref, atol=1e-5, rtol=1e-5)

    print("KERNEL_OK")
</pallas_src>

<mosaic_0001>
module attributes {stable_mosaic.version = 11 : i64} {
  func.func @mlp_kernel(%arg0: i32, %arg1: memref<4x128xf32, #tpu.memory_space<vmem>>, %arg2: memref<2x4xf32, #tpu.memory_space<smem>>, %arg3: memref<2xf32, #tpu.memory_space<smem>>, %arg4: memref<1x2xf32, #tpu.memory_space<smem>>, %arg5: memref<1xf32, #tpu.memory_space<smem>>, %arg6: memref<1x128xf32, #tpu.memory_space<vmem>>) attributes {dimension_semantics = [#tpu.dimension_semantics<parallel>], iteration_bounds = array<i64: 1>, scalar_prefetch = 0 : i64, scratch_operands = 0 : i64, tpu.core_type = #tpu.core_type<tc>, window_params = [{transform_indices = @transform_0, window_bounds = array<i64: 4, 128>}, {transform_indices = @transform_1, window_bounds = array<i64: 2, 4>}, {transform_indices = @transform_2, window_bounds = array<i64: 2>}, {transform_indices = @transform_3, window_bounds = array<i64: 1, 2>}, {transform_indices = @transform_4, window_bounds = array<i64: 1>}, {transform_indices = @transform_5, window_bounds = array<i64: 1, 128>}]} {
    %c0 = arith.constant 0 : index
    %c0_0 = arith.constant 0 : index
    %0 = vector.load %arg1[%c0, %c0_0] : memref<4x128xf32, #tpu.memory_space<vmem>>, vector<1x128xf32>
    %c1 = arith.constant 1 : index
    %c0_1 = arith.constant 0 : index
    %1 = vector.load %arg1[%c1, %c0_1] : memref<4x128xf32, #tpu.memory_space<vmem>>, vector<1x128xf32>
    %c2 = arith.constant 2 : index
    %c0_2 = arith.constant 0 : index
    %2 = vector.load %arg1[%c2, %c0_2] : memref<4x128xf32, #tpu.memory_space<vmem>>, vector<1x128xf32>
    %c3 = arith.constant 3 : index
    %c0_3 = arith.constant 0 : index
    %3 = vector.load %arg1[%c3, %c0_3] : memref<4x128xf32, #tpu.memory_space<vmem>>, vector<1x128xf32>
    %c0_4 = arith.constant 0 : index
    %c0_5 = arith.constant 0 : index
    %4 = memref.load %arg2[%c0_4, %c0_5] : memref<2x4xf32, #tpu.memory_space<smem>>
    %5 = vector.broadcast %4 : f32 to vector<1x128xf32>
    %6 = arith.mulf %5, %0 : vector<1x128xf32>
    %c0_6 = arith.constant 0 : index
    %c1_7 = arith.constant 1 : index
    %7 = memref.load %arg2[%c0_6, %c1_7] : memref<2x4xf32, #tpu.memory_space<smem>>
    %8 = vector.broadcast %7 : f32 to vector<1x128xf32>
    %9 = arith.mulf %8, %1 : vector<1x128xf32>
    %10 = arith.addf %6, %9 : vector<1x128xf32>
    %c0_8 = arith.constant 0 : index
    %c2_9 = arith.constant 2 : index
    %11 = memref.load %arg2[%c0_8, %c2_9] : memref<2x4xf32, #tpu.memory_space<smem>>
    %12 = vector.broadcast %11 : f32 to vector<1x128xf32>
    %13 = arith.mulf %12, %2 : vector<1x128xf32>
    %14 = arith.addf %10, %13 : vector<1x128xf32>
    %c0_10 = arith.constant 0 : index
    %c3_11 = arith.constant 3 : index
    %15 = memref.load %arg2[%c0_10, %c3_11] : memref<2x4xf32, #tpu.memory_space<smem>>
    %16 = vector.broadcast %15 : f32 to vector<1x128xf32>
    %17 = arith.mulf %16, %3 : vector<1x128xf32>
    %18 = arith.addf %14, %17 : vector<1x128xf32>
    %c0_12 = arith.constant 0 : index
    %19 = memref.load %arg3[%c0_12] : memref<2xf32, #tpu.memory_space<smem>>
    %20 = vector.broadcast %19 : f32 to vector<1x128xf32>
    %21 = arith.addf %18, %20 : vector<1x128xf32>
    %c1_13 = arith.constant 1 : index
    %c0_14 = arith.constant 0 : index
    %22 = memref.load %arg2[%c1_13, %c0_14] : memref<2x4xf32, #tpu.memory_space<smem>>
    %23 = vector.broadcast %22 : f32 to vector<1x128xf32>
    %24 = arith.mulf %23, %0 : vector<1x128xf32>
    %c1_15 = arith.constant 1 : index
    %c1_16 = arith.constant 1 : index
    %25 = memref.load %arg2[%c1_15, %c1_16] : memref<2x4xf32, #tpu.memory_space<smem>>
    %26 = vector.broadcast %25 : f32 to vector<1x128xf32>
    %27 = arith.mulf %26, %1 : vector<1x128xf32>
    %28 = arith.addf %24, %27 : vector<1x128xf32>
    %c1_17 = arith.constant 1 : index
    %c2_18 = arith.constant 2 : index
    %29 = memref.load %arg2[%c1_17, %c2_18] : memref<2x4xf32, #tpu.memory_space<smem>>
    %30 = vector.broadcast %29 : f32 to vector<1x128xf32>
    %31 = arith.mulf %30, %2 : vector<1x128xf32>
    %32 = arith.addf %28, %31 : vector<1x128xf32>
    %c1_19 = arith.constant 1 : index
    %c3_20 = arith.constant 3 : index
    %33 = memref.load %arg2[%c1_19, %c3_20] : memref<2x4xf32, #tpu.memory_space<smem>>
    %34 = vector.broadcast %33 : f32 to vector<1x128xf32>
    %35 = arith.mulf %34, %3 : vector<1x128xf32>
    %36 = arith.addf %32, %35 : vector<1x128xf32>
    %c1_21 = arith.constant 1 : index
    %37 = memref.load %arg3[%c1_21] : memref<2xf32, #tpu.memory_space<smem>>
    %38 = vector.broadcast %37 : f32 to vector<1x128xf32>
    %39 = arith.addf %36, %38 : vector<1x128xf32>
    %cst = arith.constant 0.000000e+00 : f32
    %40 = vector.broadcast %cst : f32 to vector<1x128xf32>
    %41 = arith.maximumf %21, %40 : vector<1x128xf32>
    %cst_22 = arith.constant 0.000000e+00 : f32
    %42 = vector.broadcast %cst_22 : f32 to vector<1x128xf32>
    %43 = arith.maximumf %39, %42 : vector<1x128xf32>
    %c0_23 = arith.constant 0 : index
    %c0_24 = arith.constant 0 : index
    %44 = memref.load %arg4[%c0_23, %c0_24] : memref<1x2xf32, #tpu.memory_space<smem>>
    %45 = vector.broadcast %44 : f32 to vector<1x128xf32>
    %46 = arith.mulf %45, %41 : vector<1x128xf32>
    %c0_25 = arith.constant 0 : index
    %c1_26 = arith.constant 1 : index
    %47 = memref.load %arg4[%c0_25, %c1_26] : memref<1x2xf32, #tpu.memory_space<smem>>
    %48 = vector.broadcast %47 : f32 to vector<1x128xf32>
    %49 = arith.mulf %48, %43 : vector<1x128xf32>
    %50 = arith.addf %46, %49 : vector<1x128xf32>
    %c0_27 = arith.constant 0 : index
    %51 = memref.load %arg5[%c0_27] : memref<1xf32, #tpu.memory_space<smem>>
    %52 = vector.broadcast %51 : f32 to vector<1x128xf32>
    %53 = arith.addf %50, %52 : vector<1x128xf32>
    %c0_28 = arith.constant 0 : index
    %c0_29 = arith.constant 0 : index
    %54 = vector.load %arg6[%c0_28, %c0_29] : memref<1x128xf32, #tpu.memory_space<vmem>>, vector<1x128xf32>
    tpu.vector_store %arg6[%c0_28, %c0_29], %53 {strides = array<i32>} : memref<1x128xf32, #tpu.memory_space<vmem>>, vector<1x128xf32>,
    return
  }
  func.func @transform_0(%arg0: i32) -> (i32, i32) {
    %c0_i32 = arith.constant 0 : i32
    %c0_i32_0 = arith.constant 0 : i32
    return %c0_i32, %arg0 : i32, i32
  }
  func.func @transform_1(%arg0: i32) -> (i32, i32) {
    %c0_i32 = arith.constant 0 : i32
    %c0_i32_0 = arith.constant 0 : i32
    %c0_i32_1 = arith.constant 0 : i32
    return %c0_i32, %c0_i32_0 : i32, i32
  }
  func.func @transform_2(%arg0: i32) -> i32 {
    %c0_i32 = arith.constant 0 : i32
    %c0_i32_0 = arith.constant 0 : i32
    return %c0_i32 : i32
  }
  func.func @transform_3(%arg0: i32) -> (i32, i32) {
    %c0_i32 = arith.constant 0 : i32
    %c0_i32_0 = arith.constant 0 : i32
    %c0_i32_1 = arith.constant 0 : i32
    return %c0_i32, %c0_i32_0 : i32, i32
  }
  func.func @transform_4(%arg0: i32) -> i32 {
    %c0_i32 = arith.constant 0 : i32
    %c0_i32_0 = arith.constant 0 : i32
    return %c0_i32 : i32
  }
  func.func @transform_5(%arg0: i32) -> (i32, i32) {
    %c0_i32 = arith.constant 0 : i32
    %c0_i32_0 = arith.constant 0 : i32
    return %c0_i32, %arg0 : i32, i32
  }
}

</mosaic_0001>

<llo_original>
// kernel: net_forward.1
$region0: #{net_forward.1}
  #allocation0 [shape = 'u32[]', space=smem, size = 0x4, offset = 0x4, fixed_abs, tag = 'smem constant byte address 0x4 - core index']
  #allocation1 [shape = 'u32[72,128]{1,0:T(1,128)}', space=vmem, size = 0x9000, scoped, tag = 'internal scratch']
  #allocation2 [shape = 'f32[1]{0:T(128)S(6)}', space=smem, size = 0x200, scoped, tag = 'scoped memory for net_forward.1']
  %s0 = inlined_call_operand.vmem [shape: f32[4,128], index: 0, kind: input, shape index: {}]
  %s1 = inlined_call_operand.vmem [shape: f32[2,4], index: 1, kind: input, shape index: {}]
  %s2 = inlined_call_operand.vmem [shape: f32[2], index: 2, kind: input, shape index: {}]
  %s3 = inlined_call_operand.vmem [shape: f32[1,2], index: 3, kind: input, shape index: {}]
  %s4 = inlined_call_operand.<no memory space> [shape: f32[1], index: 4, kind: input, shape index: {}]
  %s5 = inlined_call_operand.vmem [shape: f32[1,128], index: 5, kind: output, shape index: {}]
  %s6 = sld [smem:[#allocation0]]
  $region42: #{net_forward.1} parent=0
    _
  %s8 = ssub.s32 1, %s6
  %s9 = scalar_select 0, %s8, %s6
  %10 = sst [smem:[#allocation2]] %s4
  $region1: #{net_forward.1} parent=0
    #allocation3 [shape = 'u8[1024]{0}', space=smem, size = 0x400, scoped, tag = 'input window, operand 1, single buffered']
    #allocation4 [shape = 's32[1]{0}', space=sflag, size = 0x4, scoped, tag = 'scoped memory for net_forward.1']
    #allocation5 [shape = 'u8[512]{0}', space=smem, size = 0x200, scoped, tag = 'input window, operand 2, single buffered']
    #allocation6 [shape = 's32[1]{0}', space=sflag, size = 0x4, scoped, tag = 'scoped memory for net_forward.1']
    #allocation7 [shape = 'u8[512]{0}', space=smem, size = 0x200, scoped, tag = 'input window, operand 3, single buffered']
    %11 = vsyncpa [#allocation4], 0
    %12 = vsyncpa [#allocation6], 0
    // Predicated region
    $region2: #{net_forward.1} parent=1 // pred_check
      _
    $region3: #{net_forward.1} parent=1 // pred_check_branch
      %14 = sbr.rel (0) target = $region5
    $region4: #{net_forward.1} parent=1 // pred_region
      _
    $region5: #{net_forward.1} parent=1 // pred_fallthru
      _
    // Predicated region
    $region6: #{net_forward.1} parent=1 // pred_check
      _
    $region7: #{net_forward.1} parent=1 // pred_check_branch
      %16 = sbr.rel (0) target = $region9
    $region8: #{net_forward.1} parent=1 // pred_region
      %18 = vsyncadd [#allocation4], 0
      %s20 = sshll.u32 %s1, 4
      %s21 = int_to_ptr.vmem [resolvable:$true] %s20
      %23 = dma.vmem_to_smem %s21, 32, [#allocation3], [#allocation4]
    $region9: #{net_forward.1} parent=1 // pred_fallthru
      _
    // Predicated region
    $region10: #{net_forward.1} parent=1 // pred_check
      _
    $region11: #{net_forward.1} parent=1 // pred_check_branch
      %25 = sbr.rel (0) target = $region13
    $region12: #{net_forward.1} parent=1 // pred_region
      %27 = vsyncadd [#allocation6], 0
      %s29 = sshll.u32 %s2, 4
      %s30 = int_to_ptr.vmem [resolvable:$true] %s29
      %32 = dma.vmem_to_smem %s30, 16, [#allocation5], [#allocation6]
    $region13: #{net_forward.1} parent=1 // pred_fallthru
      _
    // Predicated region
    $region14: #{net_forward.1} parent=1 // pred_check
      _
    $region15: #{net_forward.1} parent=1 // pred_check_branch
      %34 = sbr.rel (0) target = $region17
    $region16: #{net_forward.1} parent=1 // pred_region
      %36 = vsyncadd [#allocation6], 0
      %s38 = sshll.u32 %s3, 4
      %s39 = int_to_ptr.vmem [resolvable:$true] %s38
      %41 = dma.vmem_to_smem %s39, 16, [#allocation7], [#allocation6]
    $region17: #{net_forward.1} parent=1 // pred_fallthru
      _
    // Predicated region
    $region18: #{net_forward.1} parent=1 // pred_check
      _
    $region19: #{net_forward.1} parent=1 // pred_check_branch
      %43 = sbr.rel (0) target = $region21
    $region20: #{net_forward.1} parent=1 // pred_region
      _
    $region21: #{net_forward.1} parent=1 // pred_fallthru
      _
    // Predicated region
    $region22: #{net_forward.1} parent=1 // pred_check
      _
    $region23: #{net_forward.1} parent=1 // pred_check_branch
      %45 = sbr.rel (0) target = $region25
    $region24: #{net_forward.1} parent=1 // pred_region
      %47 = dma.done [#allocation4], 32
    $region25: #{net_forward.1} parent=1 // pred_fallthru
      _
    // Predicated region
    $region26: #{net_forward.1} parent=1 // pred_check
      _
    $region27: #{net_forward.1} parent=1 // pred_check_branch
      %49 = sbr.rel (0) target = $region29
    $region28: #{net_forward.1} parent=1 // pred_region
      %51 = dma.done [#allocation6], 16
    $region29: #{net_forward.1} parent=1 // pred_fallthru
      _
    // Predicated region
    $region30: #{net_forward.1} parent=1 // pred_check
      _
    $region31: #{net_forward.1} parent=1 // pred_check_branch
      %53 = sbr.rel (0) target = $region33
    $region32: #{net_forward.1} parent=1 // pred_region
      %55 = dma.done [#allocation6], 16
    $region33: #{net_forward.1} parent=1 // pred_fallthru
      _
    %56 = sfence
    %v57 = vld [vmem:[%s0] sm:$0x1]
    %v58 = vld [vmem:[%s0 + $0x1] sm:$0x1]
    %v59 = vld [vmem:[%s0 + $0x2] sm:$0x1]
    %v60 = vld [vmem:[%s0 + $0x3] sm:$0x1]
    %s61 = sld [smem:[#allocation3]]
    %v62 = vstv %s61
    %v63 = vmul.f32 %v62, %v57
    %s64 = sld [smem:[#allocation3 + $0x1]]
    %v65 = vstv %s64
    %v66 = vmul.f32 %v65, %v58
    %v67 = vadd.f32 %v63, %v66
    %s68 = sld [smem:[#allocation3 + $0x2]]
    %v69 = vstv %s68
    %v70 = vmul.f32 %v69, %v59
    %v71 = vadd.f32 %v67, %v70
    %s72 = sld [smem:[#allocation3 + $0x3]]
    %v73 = vstv %s72
    %v74 = vmul.f32 %v73, %v60
    %v75 = vadd.f32 %v71, %v74
    %s76 = sld [smem:[#allocation5]]
    %v77 = vstv %s76
    %v78 = vadd.f32 %v75, %v77
    %s79 = sld [smem:[#allocation3 + $0x80]]
    %v80 = vstv %s79
    %v81 = vmul.f32 %v80, %v57
    %s82 = sld [smem:[#allocation3 + $0x81]]
    %v83 = vstv %s82
    %v84 = vmul.f32 %v83, %v58
    %v85 = vadd.f32 %v81, %v84
    %s86 = sld [smem:[#allocation3 + $0x82]]
    %v87 = vstv %s86
    %v88 = vmul.f32 %v87, %v59
    %v89 = vadd.f32 %v85, %v88
    %s90 = sld [smem:[#allocation3 + $0x83]]
    %v91 = vstv %s90
    %v92 = vmul.f32 %v91, %v60
    %v93 = vadd.f32 %v89, %v92
    %s94 = sld [smem:[#allocation5 + $0x1]]
    %v95 = vstv %s94
    %v96 = vadd.f32 %v93, %v95
    %v97 = vmax.f32 %v78, 0.0
    %v98 = vmax.f32 %v96, 0.0
    %s99 = sld [smem:[#allocation7]]
    %v100 = vstv %s99
    %v101 = vmul.f32 %v100, %v97
    %s102 = sld [smem:[#allocation7 + $0x1]]
    %v103 = vstv %s102
    %v104 = vmul.f32 %v103, %v98
    %v105 = vadd.f32 %v101, %v104
    %s106 = sld [smem:[#allocation2]]
    %v107 = vstv %s106
    %v108 = vadd.f32 %v105, %v107
    %109 = vst [vmem:[%s5] sm:$0x1] %v108
    // Predicated region
    $region34: #{net_forward.1} parent=1 // pred_check
      _
    $region35: #{net_forward.1} parent=1 // pred_check_branch
      %111 = sbr.rel (0) target = $region37
    $region36: #{net_forward.1} parent=1 // pred_region
      _
    $region37: #{net_forward.1} parent=1 // pred_fallthru
      _
    // Predicated region
    $region38: #{net_forward.1} parent=1 // pred_check
      _
    $region39: #{net_forward.1} parent=1 // pred_check_branch
      %113 = sbr.rel (0) target = $region41
    $region40: #{net_forward.1} parent=1 // pred_region
      _
    $region41: #{net_forward.1} parent=1 // pred_fallthru
      _
    %114 = vsyncpa [#allocation4], 1
    %115 = vsyncpa [#allocation6], 1

</llo_original>
